<compile_context>
chip_gen: v5e
topology: v5e:2x2
jax: 0.10.0
libtpu: 0.0.40
codegen_flags: <defaults>
</compile_context>

<pallas_src>
import functools

import jax
import jax.numpy as jnp
from jax.experimental import pallas as pl
from jax.experimental.pallas import tpu as pltpu


# ---------------------------------------------------------------------------
# Kernel
# ---------------------------------------------------------------------------
def _maxpool_kernel(x_ref, s_ref, o_ref, *, pool_size, exact_f32):
    """x_ref: (TR, TT) input tile; s_ref: (pool, TT, TTp) bf16 0/1 selection;
    o_ref: (TR, TTp) pooled output tile."""
    x = x_ref[...]

    if exact_f32:
        # Exact 3-way bf16 split of f32 x: x == hi + mid + lo (each bf16).
        hi = x.astype(jnp.bfloat16)
        r1 = x - hi.astype(jnp.float32)
        mid = r1.astype(jnp.bfloat16)
        lo = (r1 - mid.astype(jnp.float32)).astype(jnp.bfloat16)
        parts = (hi, mid, lo)               # 3 single-pass bf16 matmuls, exact
    else:
        parts = (x,)                        # bf16 activations: 1 MXU pass, exact

    def tap(j):
        sel_j = s_ref[j]                    # (TT, TTp) bf16, one 1 per column
        acc = None
        for p in parts:
            d = jnp.dot(p, sel_j,
                        preferred_element_type=jnp.float32,
                        precision=jax.lax.Precision.DEFAULT)
            acc = d if acc is None else acc + d
        return acc                          # == x[:, i*strides + j] (exact)

    best = tap(0)
    for j in range(1, pool_size):           # pool_size is tiny; static unroll
        best = jnp.maximum(best, tap(j))
    o_ref[...] = best.astype(o_ref.dtype)


# ---------------------------------------------------------------------------
# Tiling / sizing helpers
# ---------------------------------------------------------------------------
def _round_down(x, m):
    return max(m, (x // m) * m)


def _vmem_limit_bytes():
    """Generation-aware VMEM limit: 96 MiB on v5e/v6e (128 MiB phys), 48 MiB on
    v7x (64 MiB phys). Conservative fallback if the query is unavailable."""
    phys = 64 * 1024 * 1024
    try:
        phys = int(pltpu.get_tpu_info().vmem_capacity_bytes)
    except Exception:
        pass
    return int(min(96 * 1024 * 1024, phys * 3 // 4))


def _lane_target():
    """Output lane width per block: match the MXU width (128 on v5*, 256 else)."""
    try:
        kind = jax.devices()[0].device_kind.lower()
    except Exception:
        return 256
    return 128 if "v5" in kind else 256


def _pick_len_tile(length, pooled_len, strides, regular, lane_target):
    """Tile the pooled axis only when windows cannot straddle a tile boundary
    (pool <= strides, strides | T) and the tile divides the length exactly."""
    if not regular:
        return length, pooled_len
    unit = 128 * strides                       # keeps output lanes 128-aligned
    cap = max(unit, (lane_target * strides // unit) * unit)
    if length <= cap:
        return length, pooled_len
    tt = cap
    while tt >= unit:
        if length % tt == 0:
            return tt, tt // strides
        tt -= unit
    return length, pooled_len                  # rare: no aligned divisor found


def _pick_row_tile(rows, granule, per_row_bytes, budget, target=2048):
    """Largest row tile (multiple of `granule`) <= target that fits `budget`."""
    cap = max(granule, int(budget // max(per_row_bytes, 1)))
    tr = _round_down(min(target, cap), granule)
    if rows <= tr:
        return rows                            # single block == full dim (legal)
    return tr


# ---------------------------------------------------------------------------
# Wrapper (forward pass of CustomMaxPooling1D)
# ---------------------------------------------------------------------------
def custom_max_pooling1d(x, pool_size=2, strides=2):
    """x: (B, S, C, T). Returns (B, S, C, T_pooled), matching the PyTorch module."""
    b, s, c, t = x.shape
    t_pooled = (t - pool_size) // strides + 1
    assert t_pooled >= 1, "pool_size larger than T"

    orig_dtype = x.dtype
    if x.dtype not in (jnp.float32, jnp.bfloat16):
        x = x.astype(jnp.float32)
    exact_f32 = bool(x.dtype == jnp.float32)
    in_bytes = jnp.dtype(x.dtype).itemsize
    granule = 8 if exact_f32 else 16           # sublane packing granularity

    # With pool <= strides and strides | T, windows tile T exactly
    # (T == strides * T_pooled): channels can be folded into the pooled axis
    # and the length axis can be tiled without window straddle.
    regular = (pool_size <= strides) and (t % strides == 0)

    # Fold C (and S) into the pooled axis when T_pooled is lane-sparse so the
    # output block lane width stays >= 128. All reshapes are free (contiguous).
    rows, length, pooled_len = b * s * c, t, t_pooled
    if regular and t_pooled < 128:
        rows, length, pooled_len = b * s, c * t, c * t_pooled
        if pooled_len < 128 and s > 1:
            rows, length, pooled_len = b, s * c * t, s * c * t_pooled
    x2 = x.reshape(rows, length)

    tt, ttp = _pick_len_tile(length, pooled_len, strides, regular, _lane_target())
    n_len_tiles = length // tt
    assert n_len_tiles * ttp == pooled_len, "length tiling does not cover output"

    # 0/1 selection (bf16, exact): sel[j, k, i] = 1 iff k == i*strides + j.
    k_idx = jnp.arange(tt, dtype=jnp.int32)[None, :, None]
    i_idx = jnp.arange(ttp, dtype=jnp.int32)[None, None, :]
    j_idx = jnp.arange(pool_size, dtype=jnp.int32)[:, None, None]
    sel = (k_idx == i_idx * strides + j_idx).astype(jnp.bfloat16)
    sel_bytes = int(sel.size) * 2

    vmem_limit = _vmem_limit_bytes()
    # Rough per-row VMEM footprint: double-buffered in/out tiles plus bf16-split
    # intermediates on the f32 path. Leave headroom for sel and Mosaic scratch.
    work_factor = 3 if exact_f32 else 2
    per_row_bytes = work_factor * (tt + ttp) * in_bytes * 2
    budget = vmem_limit - 2 * sel_bytes - (8 << 20)
    tr = _pick_row_tile(rows, granule, per_row_bytes, budget)

    # Megacore: keep >= 2 grid blocks when possible so both TensorCores get work.
    if rows <= tr and n_len_tiles == 1 and rows >= 2 * granule:
        tr = _round_down(rows // 2, granule)
    n_row_tiles = pl.cdiv(rows, tr)

    kernel = functools.partial(_maxpool_kernel, pool_size=pool_size,
                               exact_f32=exact_f32)

    mxu_passes = 3 if exact_f32 else 1
    cost = pl.CostEstimate(
        flops=2 * rows * length * ttp * pool_size * mxu_passes,
        transcendentals=0,
        bytes_accessed=rows * (length + pooled_len) * in_bytes + sel_bytes)

    out2 = pl.pallas_call(
        kernel,
        out_shape=jax.ShapeDtypeStruct((rows, pooled_len), x2.dtype),
        grid_spec=pltpu.PrefetchScalarGridSpec(
            num_scalar_prefetch=0,
            grid=(n_row_tiles, n_len_tiles),
            in_specs=[
                pl.BlockSpec((tr, tt), lambda i, j: (i, j)),
                pl.BlockSpec((pool_size, tt, ttp), lambda i, j: (0, 0, 0)),
            ],
            out_specs=pl.BlockSpec((tr, ttp), lambda i, j: (i, j)),
        ),
        compiler_params=pltpu.CompilerParams(
            dimension_semantics=("parallel", "parallel"),
            vmem_limit_bytes=vmem_limit,
        ),
        cost_estimate=cost,
    )(x2, sel)

    out = out2.reshape(b, s, c, t_pooled)       # free reshape back to 4-D
    return out if out.dtype == orig_dtype else out.astype(orig_dtype)


def _reference(x, pool_size, strides):
    """Pure-JAX reference: valid (un-padded) max pooling along the last axis."""
    return jax.lax.reduce_window(
        x, -jnp.inf, jax.lax.max,
        window_dimensions=(1, 1, 1, pool_size),
        window_strides=(1, 1, 1, strides),
        padding="VALID")


if __name__ == "__main__":
    B, S, C, T = 2, 4, 16, 16
    pool_size, strides = 2, 2

    key = jax.random.PRNGKey(0)
    x = jax.random.normal(key, (B, S, C, T), dtype=jnp.float32)

    out = custom_max_pooling1d(x, pool_size=pool_size, strides=strides)
    out = jax.block_until_ready(out)

    ref = _reference(x, pool_size, strides)
    t_pooled = (T - pool_size) // strides + 1
    assert out.shape == (B, S, C, t_pooled), out.shape
    assert jnp.allclose(out, ref, atol=1e-6, rtol=1e-6), "mismatch vs reference"

    print("KERNEL_OK")
</pallas_src>

<mosaic_0001>
module attributes {stable_mosaic.version = 11 : i64} {
  func.func @_maxpool_kernel(%arg0: i32, %arg1: i32, %arg2: memref<8x256xf32, #tpu.memory_space<vmem>>, %arg3: memref<2x256x128xbf16, #tpu.memory_space<vmem>>, %arg4: memref<8x128xf32, #tpu.memory_space<vmem>>) attributes {dimension_semantics = [#tpu.dimension_semantics<parallel>, #tpu.dimension_semantics<parallel>], iteration_bounds = array<i64: 1, 1>, scalar_prefetch = 0 : i64, scratch_operands = 0 : i64, tpu.core_type = #tpu.core_type<tc>, window_params = [{transform_indices = @transform_0, window_bounds = array<i64: 8, 256>}, {pipeline_mode = #tpu.pipeline_mode<synchronous>, transform_indices = @transform_1, window_bounds = array<i64: 2, 256, 128>}, {transform_indices = @transform_2, window_bounds = array<i64: 8, 128>}]} {
    %c0 = arith.constant 0 : index
    %c0_0 = arith.constant 0 : index
    %0 = vector.load %arg2[%c0, %c0_0] : memref<8x256xf32, #tpu.memory_space<vmem>>, vector<8x256xf32>
    %1 = arith.truncf %0 : vector<8x256xf32> to vector<8x256xbf16>
    %2 = arith.extf %1 : vector<8x256xbf16> to vector<8x256xf32>
    %3 = arith.subf %0, %2 : vector<8x256xf32>
    %4 = arith.truncf %3 : vector<8x256xf32> to vector<8x256xbf16>
    %5 = arith.extf %4 : vector<8x256xbf16> to vector<8x256xf32>
    %6 = arith.subf %3, %5 : vector<8x256xf32>
    %7 = arith.truncf %6 : vector<8x256xf32> to vector<8x256xbf16>
    %c0_1 = arith.constant 0 : index
    %c0_2 = arith.constant 0 : index
    %c0_3 = arith.constant 0 : index
    %8 = vector.load %arg3[%c0_1, %c0_2, %c0_3] : memref<2x256x128xbf16, #tpu.memory_space<vmem>>, vector<1x256x128xbf16>
    %9 = vector.shape_cast %8 : vector<1x256x128xbf16> to vector<256x128xbf16>
    %cst = arith.constant dense<0.000000e+00> : vector<8x128xf32>
    %10 = tpu.matmul %1, %9, %cst {dimension_numbers = #tpu.dot_dimension_numbers<[1], [0], [0], [1], [0, 0, 1, 1], [], []>} : vector<8x256xbf16>, vector<256x128xbf16>, vector<8x128xf32> -> vector<8x128xf32>
    %cst_4 = arith.constant dense<0.000000e+00> : vector<8x128xf32>
    %11 = tpu.matmul %4, %9, %cst_4 {dimension_numbers = #tpu.dot_dimension_numbers<[1], [0], [0], [1], [0, 0, 1, 1], [], []>} : vector<8x256xbf16>, vector<256x128xbf16>, vector<8x128xf32> -> vector<8x128xf32>
    %12 = arith.addf %10, %11 : vector<8x128xf32>
    %cst_5 = arith.constant dense<0.000000e+00> : vector<8x128xf32>
    %13 = tpu.matmul %7, %9, %cst_5 {dimension_numbers = #tpu.dot_dimension_numbers<[1], [0], [0], [1], [0, 0, 1, 1], [], []>} : vector<8x256xbf16>, vector<256x128xbf16>, vector<8x128xf32> -> vector<8x128xf32>
    %14 = arith.addf %12, %13 : vector<8x128xf32>
    %c1 = arith.constant 1 : index
    %c0_6 = arith.constant 0 : index
    %c0_7 = arith.constant 0 : index
    %15 = vector.load %arg3[%c1, %c0_6, %c0_7] : memref<2x256x128xbf16, #tpu.memory_space<vmem>>, vector<1x256x128xbf16>
    %16 = vector.shape_cast %15 : vector<1x256x128xbf16> to vector<256x128xbf16>
    %cst_8 = arith.constant dense<0.000000e+00> : vector<8x128xf32>
    %17 = tpu.matmul %1, %16, %cst_8 {dimension_numbers = #tpu.dot_dimension_numbers<[1], [0], [0], [1], [0, 0, 1, 1], [], []>} : vector<8x256xbf16>, vector<256x128xbf16>, vector<8x128xf32> -> vector<8x128xf32>
    %cst_9 = arith.constant dense<0.000000e+00> : vector<8x128xf32>
    %18 = tpu.matmul %4, %16, %cst_9 {dimension_numbers = #tpu.dot_dimension_numbers<[1], [0], [0], [1], [0, 0, 1, 1], [], []>} : vector<8x256xbf16>, vector<256x128xbf16>, vector<8x128xf32> -> vector<8x128xf32>
    %19 = arith.addf %17, %18 : vector<8x128xf32>
    %cst_10 = arith.constant dense<0.000000e+00> : vector<8x128xf32>
    %20 = tpu.matmul %7, %16, %cst_10 {dimension_numbers = #tpu.dot_dimension_numbers<[1], [0], [0], [1], [0, 0, 1, 1], [], []>} : vector<8x256xbf16>, vector<256x128xbf16>, vector<8x128xf32> -> vector<8x128xf32>
    %21 = arith.addf %19, %20 : vector<8x128xf32>
    %22 = arith.maximumf %14, %21 : vector<8x128xf32>
    %c0_11 = arith.constant 0 : index
    %c0_12 = arith.constant 0 : index
    %23 = vector.load %arg4[%c0_11, %c0_12] : memref<8x128xf32, #tpu.memory_space<vmem>>, vector<8x128xf32>
    tpu.vector_store %arg4[%c0_11, %c0_12], %22 {strides = array<i32>} : memref<8x128xf32, #tpu.memory_space<vmem>>, vector<8x128xf32>,
    return
  }
  func.func @transform_0(%arg0: i32, %arg1: i32) -> (i32, i32) {
    %c0_i32 = arith.constant 0 : i32
    return %arg0, %arg1 : i32, i32
  }
  func.func @transform_1(%arg0: i32, %arg1: i32) -> (i32, i32, i32) {
    %c0_i32 = arith.constant 0 : i32
    %c0_i32_0 = arith.constant 0 : i32
    %c0_i32_1 = arith.constant 0 : i32
    %c0_i32_2 = arith.constant 0 : i32
    return %c0_i32, %c0_i32_0, %c0_i32_1 : i32, i32, i32
  }
  func.func @transform_2(%arg0: i32, %arg1: i32) -> (i32, i32) {
    %c0_i32 = arith.constant 0 : i32
    return %arg0, %arg1 : i32, i32
  }
}

</mosaic_0001>

<llo_original>
// kernel: tpu_custom_call.1
$region0: #{tpu_custom_call.1}
  #allocation0 [shape = 'u32[]', space=smem, size = 0x4, offset = 0x4, fixed_abs, tag = 'smem constant byte address 0x4 - core index']
  #allocation1 [shape = 'u32[72,128]{1,0:T(1,128)}', space=vmem, size = 0x9000, scoped, tag = 'internal scratch']
  %s0 = inlined_call_operand.hbm [shape: f32[8,256], index: 0, kind: input, shape index: {}]
  %s1 = inlined_call_operand.hbm [shape: bf16[2,256,128], index: 1, kind: input, shape index: {}]
  %s2 = inlined_call_operand.hbm [shape: f32[8,128], index: 2, kind: output, shape index: {}]
  %s3 = sld [smem:[#allocation0]]
  $region26: #{tpu_custom_call.1} parent=0
    _
  %s5 = ssub.s32 1, %s3
  %s6 = scalar_select 0, %s5, %s3
  $region1: #{tpu_custom_call.1} parent=0
    #allocation2 [shape = 'u8[8192]{0}', space=vmem, size = 0x2000, scoped, tag = 'input window, operand 0, single buffered']
    #allocation3 [shape = 's32[1]{0}', space=sflag, size = 0x4, scoped, tag = 'scoped memory for tpu_custom_call.1']
    #allocation4 [shape = 's32[1]{0}', space=sflag, size = 0x4, scoped, tag = 'scoped memory for tpu_custom_call.1']
    #allocation5 [shape = 'u8[131072]{0}', space=vmem, size = 0x20000, scoped, tag = 'input window, operand 1, single buffered']
    #allocation6 [shape = 's32[1]{0}', space=sflag, size = 0x4, scoped, tag = 'scoped memory for tpu_custom_call.1']
    #allocation7 [shape = 'u8[4096]{0}', space=vmem, size = 0x1000, scoped, tag = 'output window, operand 0, single buffered']
    %7 = vsyncpa [#allocation3], 0
    %8 = vsyncpa [#allocation6], 0
    %9 = vsyncpa [#allocation4], 0
    // Predicated region
    $region2: #{tpu_custom_call.1} parent=1 // pred_check
      _
    $region3: #{tpu_custom_call.1} parent=1 // pred_check_branch
      %11 = sbr.rel (0) target = $region5
    $region4: #{tpu_custom_call.1} parent=1 // pred_region
      %13 = vsyncadd [#allocation3], 0
      %s15 = sshll.u32 %s0, 4
      %s16 = int_to_ptr.hbm [resolvable:$true] %s15
      %s17 = sshll.u32 [#allocation2], 4
      %s18 = int_to_ptr.vmem [resolvable:$true] %s17
      %20 = dma.hbm_to_vmem [thread:$0]  %s16, 256, %s18, [#allocation3]
    $region5: #{tpu_custom_call.1} parent=1 // pred_fallthru
      _
    // Predicated region
    $region6: #{tpu_custom_call.1} parent=1 // pred_check
      _
    $region7: #{tpu_custom_call.1} parent=1 // pred_check_branch
      %22 = sbr.rel (0) target = $region9
    $region8: #{tpu_custom_call.1} parent=1 // pred_region
      %24 = vsyncadd [#allocation6], 0
      %s25 = sshll.u32 %s1, 4
      %s26 = int_to_ptr.hbm [resolvable:$true] %s25
      %s27 = sshll.u32 [#allocation5], 4
      %s28 = int_to_ptr.vmem [resolvable:$true] %s27
      %33 = dma.hbm_to_vmem [thread:$0]  %s26, 4096, %s28, [#allocation6], 64, 64, 4
    $region9: #{tpu_custom_call.1} parent=1 // pred_fallthru
      _
    // Predicated region
    $region10: #{tpu_custom_call.1} parent=1 // pred_check
      _
    $region11: #{tpu_custom_call.1} parent=1 // pred_check_branch
      %35 = sbr.rel (0) target = $region13
    $region12: #{tpu_custom_call.1} parent=1 // pred_region
      %37 = dma.done [#allocation3], 256
    $region13: #{tpu_custom_call.1} parent=1 // pred_fallthru
      _
    // Predicated region
    $region14: #{tpu_custom_call.1} parent=1 // pred_check
      _
    $region15: #{tpu_custom_call.1} parent=1 // pred_check_branch
      %39 = sbr.rel (0) target = $region17
    $region16: #{tpu_custom_call.1} parent=1 // pred_region
      %41 = dma.done [#allocation6], 4096
    $region17: #{tpu_custom_call.1} parent=1 // pred_fallthru
      _
    %v42 = vld [vmem:[#allocation2] sm:$0xff]
    %v43 = vld [vmem:[#allocation2 + $0x8] sm:$0xff]
    %v44 = vpack.c.bf16 %v43, %v42
    %v45 = vunpack.c.l.bf16 %v44
    %v46 = vunpack.c.h.bf16 %v44
    %v47 = vsub.f32 %v42, %v45
    %v48 = vsub.f32 %v43, %v46
    %v49 = vpack.c.bf16 %v48, %v47
    %v50 = vunpack.c.l.bf16 %v49
    %v51 = vunpack.c.h.bf16 %v49
    %v52 = vsub.f32 %v47, %v50
    %v53 = vsub.f32 %v48, %v51
    %v54 = vpack.c.bf16 %v52, %v52
    %v55 = vpack.c.bf16 %v53, %v53
    %v56 = vld [vmem:[#allocation5] sm:$0xf]
    %v57 = vld [vmem:[#allocation5 + $0x4] sm:$0xf]
    %v58 = vld [vmem:[#allocation5 + $0x8] sm:$0xf]
    %v59 = vld [vmem:[#allocation5 + $0xc] sm:$0xf]
    %v60 = vld [vmem:[#allocation5 + $0x10] sm:$0xf]
    %v61 = vld [vmem:[#allocation5 + $0x14] sm:$0xf]
    %v62 = vld [vmem:[#allocation5 + $0x18] sm:$0xf]
    %v63 = vld [vmem:[#allocation5 + $0x1c] sm:$0xf]
    %v64 = vld [vmem:[#allocation5 + $0x20] sm:$0xf]
    %v65 = vld [vmem:[#allocation5 + $0x24] sm:$0xf]
    %v66 = vld [vmem:[#allocation5 + $0x28] sm:$0xf]
    %v67 = vld [vmem:[#allocation5 + $0x2c] sm:$0xf]
    %v68 = vld [vmem:[#allocation5 + $0x30] sm:$0xf]
    %v69 = vld [vmem:[#allocation5 + $0x34] sm:$0xf]
    %v70 = vld [vmem:[#allocation5 + $0x38] sm:$0xf]
    %v71 = vld [vmem:[#allocation5 + $0x3c] sm:$0xf]
    %v72 = vld [vmem:[#allocation5 + $0x40] sm:$0xf]
    %v73 = vld [vmem:[#allocation5 + $0x44] sm:$0xf]
    %v74 = vld [vmem:[#allocation5 + $0x48] sm:$0xf]
    %v75 = vld [vmem:[#allocation5 + $0x4c] sm:$0xf]
    %v76 = vld [vmem:[#allocation5 + $0x50] sm:$0xf]
    %v77 = vld [vmem:[#allocation5 + $0x54] sm:$0xf]
    %v78 = vld [vmem:[#allocation5 + $0x58] sm:$0xf]
    %v79 = vld [vmem:[#allocation5 + $0x5c] sm:$0xf]
    %v80 = vld [vmem:[#allocation5 + $0x60] sm:$0xf]
    %v81 = vld [vmem:[#allocation5 + $0x64] sm:$0xf]
    %v82 = vld [vmem:[#allocation5 + $0x68] sm:$0xf]
    %v83 = vld [vmem:[#allocation5 + $0x6c] sm:$0xf]
    %v84 = vld [vmem:[#allocation5 + $0x70] sm:$0xf]
    %v85 = vld [vmem:[#allocation5 + $0x74] sm:$0xf]
    %v86 = vld [vmem:[#allocation5 + $0x78] sm:$0xf]
    %v87 = vld [vmem:[#allocation5 + $0x7c] sm:$0xf]
    %v89 = vunpack.c.l.b16 %v49
    %v90 = vunpack.c.h.b16 %v49
    %v91 = vpack.c.b16 %v89, %v89
    %v92 = vpack.c.b16 %v90, %v90
    %v127 = vunpack.c.l.b16 %v56
    %v128 = vunpack.c.l.b16 %v57
    %v129 = vunpack.c.l.b16 %v58
    %v130 = vunpack.c.l.b16 %v59
    %v131 = vunpack.c.l.b16 %v60
    %v132 = vunpack.c.l.b16 %v61
    %v133 = vunpack.c.l.b16 %v62
    %v134 = vunpack.c.l.b16 %v63
    %v135 = vunpack.c.l.b16 %v64
    %v136 = vunpack.c.l.b16 %v65
    %v137 = vunpack.c.l.b16 %v66
    %v138 = vunpack.c.l.b16 %v67
    %v139 = vunpack.c.l.b16 %v68
    %v140 = vunpack.c.l.b16 %v69
    %v141 = vunpack.c.l.b16 %v70
    %v142 = vunpack.c.l.b16 %v71
    %v143 = vunpack.c.l.b16 %v72
    %v144 = vunpack.c.l.b16 %v73
    %v145 = vunpack.c.l.b16 %v74
    %v146 = vunpack.c.l.b16 %v75
    %v147 = vunpack.c.l.b16 %v76
    %v148 = vunpack.c.l.b16 %v77
    %v149 = vunpack.c.l.b16 %v78
    %v150 = vunpack.c.l.b16 %v79
    %v151 = vunpack.c.l.b16 %v80
    %v152 = vunpack.c.l.b16 %v81
    %v153 = vunpack.c.l.b16 %v82
    %v154 = vunpack.c.l.b16 %v83
    %v155 = vunpack.c.l.b16 %v84
    %v156 = vunpack.c.l.b16 %v85
    %v157 = vunpack.c.l.b16 %v86
    %v158 = vunpack.c.l.b16 %v87
    %v159 = vpack.c.b16 %v128, %v127
    %v160 = vpack.c.b16 %v130, %v129
    %v161 = vpack.c.b16 %v132, %v131
    %v162 = vpack.c.b16 %v134, %v133
    %v163 = vpack.c.b16 %v136, %v135
    %v164 = vpack.c.b16 %v138, %v137
    %v165 = vpack.c.b16 %v140, %v139
    %v166 = vpack.c.b16 %v142, %v141
    %v167 = vpack.c.b16 %v144, %v143
    %v168 = vpack.c.b16 %v146, %v145
    %v169 = vpack.c.b16 %v148, %v147
    %v170 = vpack.c.b16 %v150, %v149
    %v171 = vpack.c.b16 %v152, %v151
    %v172 = vpack.c.b16 %v154, %v153
    %v173 = vpack.c.b16 %v156, %v155
    %v174 = vpack.c.b16 %v158, %v157
    %191 = vmatpush.bf16.msra.mxu0 %v166
    %192 = vmatpush.bf16.msra.mxu0 %v165
    %193 = vmatpush.bf16.msra.mxu0 %v164
    %194 = vmatpush.bf16.msra.mxu0 %v163
    %195 = vmatpush.bf16.msra.mxu0 %v162
    %196 = vmatpush.bf16.msra.mxu0 %v161
    %197 = vmatpush.bf16.msra.mxu0 %v160
    %198 = vmatpush.bf16.msra.mxu0 %v159
    %199 = vmatmul.bf16.gmra.mxu0 %v91
    %v200 = vpop.f32.mrf.mxu0
    %v201 = vadd.f32 0.0, %v200
    %v202 = vpop.f32.mrf.mxu0
    %203 = vdwg.mxu0
    %204 = vmatpush.bf16.msra.mxu0 %v174
    %205 = vmatpush.bf16.msra.mxu0 %v173
    %206 = vmatpush.bf16.msra.mxu0 %v172
    %207 = vmatpush.bf16.msra.mxu0 %v171
    %208 = vmatpush.bf16.msra.mxu0 %v170
    %209 = vmatpush.bf16.msra.mxu0 %v169
    %210 = vmatpush.bf16.msra.mxu0 %v168
    %211 = vmatpush.bf16.msra.mxu0 %v167
    %212 = vmatmul.bf16.gmra.mxu0 %v92
    %v213 = vpop.f32.mrf.mxu0
    %v214 = vadd.f32 %v201, %v213
    %v215 = vpop.f32.mrf.mxu0
    %216 = vdwg.mxu0
    %v218 = vunpack.c.l.b16 %v44
    %v219 = vunpack.c.h.b16 %v44
    %v220 = vpack.c.b16 %v218, %v218
    %v221 = vpack.c.b16 %v219, %v219
    %224 = vmatpush.bf16.msra.mxu0 %v166
    %225 = vmatpush.bf16.msra.mxu0 %v165
    %226 = vmatpush.bf16.msra.mxu0 %v164
    %227 = vmatpush.bf16.msra.mxu0 %v163
    %228 = vmatpush.bf16.msra.mxu0 %v162
    %229 = vmatpush.bf16.msra.mxu0 %v161
    %230 = vmatpush.bf16.msra.mxu0 %v160
    %231 = vmatpush.bf16.msra.mxu0 %v159
    %232 = vmatmul.bf16.gmra.mxu0 %v220
    %v233 = vpop.f32.mrf.mxu0
    %v234 = vadd.f32 %v214, %v233
    %v235 = vpop.f32.mrf.mxu0
    %236 = vdwg.mxu0
    %237 = vmatpush.bf16.msra.mxu0 %v174
    %238 = vmatpush.bf16.msra.mxu0 %v173
    %239 = vmatpush.bf16.msra.mxu0 %v172
    %240 = vmatpush.bf16.msra.mxu0 %v171
    %241 = vmatpush.bf16.msra.mxu0 %v170
    %242 = vmatpush.bf16.msra.mxu0 %v169
    %243 = vmatpush.bf16.msra.mxu0 %v168
    %244 = vmatpush.bf16.msra.mxu0 %v167
    %245 = vmatmul.bf16.gmra.mxu0 %v221
    %v246 = vpop.f32.mrf.mxu0
    %v247 = vadd.f32 %v234, %v246
    %v248 = vpop.f32.mrf.mxu0
    %249 = vdwg.mxu0
    %250 = vmatpush.bf16.msra.mxu0 %v166
    %251 = vmatpush.bf16.msra.mxu0 %v165
    %252 = vmatpush.bf16.msra.mxu0 %v164
    %253 = vmatpush.bf16.msra.mxu0 %v163
    %254 = vmatpush.bf16.msra.mxu0 %v162
    %255 = vmatpush.bf16.msra.mxu0 %v161
    %256 = vmatpush.bf16.msra.mxu0 %v160
    %257 = vmatpush.bf16.msra.mxu0 %v159
    %258 = vmatmul.bf16.gmra.mxu0 %v54
    %v259 = vpop.f32.mrf.mxu0
    %v260 = vadd.f32 0.0, %v259
    %v261 = vpop.f32.mrf.mxu0
    %262 = vdwg.mxu0
    %263 = vmatpush.bf16.msra.mxu0 %v174
    %264 = vmatpush.bf16.msra.mxu0 %v173
    %265 = vmatpush.bf16.msra.mxu0 %v172
    %266 = vmatpush.bf16.msra.mxu0 %v171
    %267 = vmatpush.bf16.msra.mxu0 %v170
    %268 = vmatpush.bf16.msra.mxu0 %v169
    %269 = vmatpush.bf16.msra.mxu0 %v168
    %270 = vmatpush.bf16.msra.mxu0 %v167
    %271 = vmatmul.bf16.gmra.mxu0 %v55
    %v272 = vpop.f32.mrf.mxu0
    %v273 = vadd.f32 %v260, %v272
    %v274 = vpop.f32.mrf.mxu0
    %275 = vdwg.mxu0
    %v276 = vadd.f32 %v247, %v273
    %s277 = scalar_lea.vmem [#allocation5], 128
    %v278 = vld [vmem:[%s277] sm:$0xf]
    %v279 = vld [vmem:[%s277 + $0x4] sm:$0xf]
    %v280 = vld [vmem:[%s277 + $0x8] sm:$0xf]
    %v281 = vld [vmem:[%s277 + $0xc] sm:$0xf]
    %v282 = vld [vmem:[%s277 + $0x10] sm:$0xf]
    %v283 = vld [vmem:[%s277 + $0x14] sm:$0xf]
    %v284 = vld [vmem:[%s277 + $0x18] sm:$0xf]
    %v285 = vld [vmem:[%s277 + $0x1c] sm:$0xf]
    %v286 = vld [vmem:[%s277 + $0x20] sm:$0xf]
    %v287 = vld [vmem:[%s277 + $0x24] sm:$0xf]
    %v288 = vld [vmem:[%s277 + $0x28] sm:$0xf]
    %v289 = vld [vmem:[%s277 + $0x2c] sm:$0xf]
    %v290 = vld [vmem:[%s277 + $0x30] sm:$0xf]
    %v291 = vld [vmem:[%s277 + $0x34] sm:$0xf]
    %v292 = vld [vmem:[%s277 + $0x38] sm:$0xf]
    %v293 = vld [vmem:[%s277 + $0x3c] sm:$0xf]
    %v294 = vld [vmem:[%s277 + $0x40] sm:$0xf]
    %v295 = vld [vmem:[%s277 + $0x44] sm:$0xf]
    %v296 = vld [vmem:[%s277 + $0x48] sm:$0xf]
    %v297 = vld [vmem:[%s277 + $0x4c] sm:$0xf]
    %v298 = vld [vmem:[%s277 + $0x50] sm:$0xf]
    %v299 = vld [vmem:[%s277 + $0x54] sm:$0xf]
    %v300 = vld [vmem:[%s277 + $0x58] sm:$0xf]
    %v301 = vld [vmem:[%s277 + $0x5c] sm:$0xf]
    %v302 = vld [vmem:[%s277 + $0x60] sm:$0xf]
    %v303 = vld [vmem:[%s277 + $0x64] sm:$0xf]
    %v304 = vld [vmem:[%s277 + $0x68] sm:$0xf]
    %v305 = vld [vmem:[%s277 + $0x6c] sm:$0xf]
    %v306 = vld [vmem:[%s277 + $0x70] sm:$0xf]
    %v307 = vld [vmem:[%s277 + $0x74] sm:$0xf]
    %v308 = vld [vmem:[%s277 + $0x78] sm:$0xf]
    %v309 = vld [vmem:[%s277 + $0x7c] sm:$0xf]
    %v342 = vunpack.c.l.b16 %v278
    %v343 = vunpack.c.l.b16 %v279
    %v344 = vunpack.c.l.b16 %v280
    %v345 = vunpack.c.l.b16 %v281
    %v346 = vunpack.c.l.b16 %v282
    %v347 = vunpack.c.l.b16 %v283
    %v348 = vunpack.c.l.b16 %v284
    %v349 = vunpack.c.l.b16 %v285
    %v350 = vunpack.c.l.b16 %v286
    %v351 = vunpack.c.l.b16 %v287
    %v352 = vunpack.c.l.b16 %v288
    %v353 = vunpack.c.l.b16 %v289
    %v354 = vunpack.c.l.b16 %v290
    %v355 = vunpack.c.l.b16 %v291
    %v356 = vunpack.c.l.b16 %v292
    %v357 = vunpack.c.l.b16 %v293
    %v358 = vunpack.c.l.b16 %v294
    %v359 = vunpack.c.l.b16 %v295
    %v360 = vunpack.c.l.b16 %v296
    %v361 = vunpack.c.l.b16 %v297
    %v362 = vunpack.c.l.b16 %v298
    %v363 = vunpack.c.l.b16 %v299
    %v364 = vunpack.c.l.b16 %v300
    %v365 = vunpack.c.l.b16 %v301
    %v366 = vunpack.c.l.b16 %v302
    %v367 = vunpack.c.l.b16 %v303
    %v368 = vunpack.c.l.b16 %v304
    %v369 = vunpack.c.l.b16 %v305
    %v370 = vunpack.c.l.b16 %v306
    %v371 = vunpack.c.l.b16 %v307
    %v372 = vunpack.c.l.b16 %v308
    %v373 = vunpack.c.l.b16 %v309
    %v374 = vpack.c.b16 %v343, %v342
    %v375 = vpack.c.b16 %v345, %v344
    %v376 = vpack.c.b16 %v347, %v346
    %v377 = vpack.c.b16 %v349, %v348
    %v378 = vpack.c.b16 %v351, %v350
    %v379 = vpack.c.b16 %v353, %v352
    %v380 = vpack.c.b16 %v355, %v354
    %v381 = vpack.c.b16 %v357, %v356
    %v382 = vpack.c.b16 %v359, %v358
    %v383 = vpack.c.b16 %v361, %v360
    %v384 = vpack.c.b16 %v363, %v362
    %v385 = vpack.c.b16 %v365, %v364
    %v386 = vpack.c.b16 %v367, %v366
    %v387 = vpack.c.b16 %v369, %v368
    %v388 = vpack.c.b16 %v371, %v370
    %v389 = vpack.c.b16 %v373, %v372
    %406 = vmatpush.bf16.msra.mxu0 %v381
    %407 = vmatpush.bf16.msra.mxu0 %v380
    %408 = vmatpush.bf16.msra.mxu0 %v379
    %409 = vmatpush.bf16.msra.mxu0 %v378
    %410 = vmatpush.bf16.msra.mxu0 %v377
    %411 = vmatpush.bf16.msra.mxu0 %v376
    %412 = vmatpush.bf16.msra.mxu0 %v375
    %413 = vmatpush.bf16.msra.mxu0 %v374
    %414 = vmatmul.bf16.gmra.mxu0 %v91
    %v415 = vpop.f32.mrf.mxu0
    %v416 = vadd.f32 0.0, %v415
    %v417 = vpop.f32.mrf.mxu0
    %418 = vdwg.mxu0
    %419 = vmatpush.bf16.msra.mxu0 %v389
    %420 = vmatpush.bf16.msra.mxu0 %v388
    %421 = vmatpush.bf16.msra.mxu0 %v387
    %422 = vmatpush.bf16.msra.mxu0 %v386
    %423 = vmatpush.bf16.msra.mxu0 %v385
    %424 = vmatpush.bf16.msra.mxu0 %v384
    %425 = vmatpush.bf16.msra.mxu0 %v383
    %426 = vmatpush.bf16.msra.mxu0 %v382
    %427 = vmatmul.bf16.gmra.mxu0 %v92
    %v428 = vpop.f32.mrf.mxu0
    %v429 = vadd.f32 %v416, %v428
    %v430 = vpop.f32.mrf.mxu0
    %431 = vdwg.mxu0
    %432 = vmatpush.bf16.msra.mxu0 %v381
    %433 = vmatpush.bf16.msra.mxu0 %v380
    %434 = vmatpush.bf16.msra.mxu0 %v379
    %435 = vmatpush.bf16.msra.mxu0 %v378
    %436 = vmatpush.bf16.msra.mxu0 %v377
    %437 = vmatpush.bf16.msra.mxu0 %v376
    %438 = vmatpush.bf16.msra.mxu0 %v375
    %439 = vmatpush.bf16.msra.mxu0 %v374
    %440 = vmatmul.bf16.gmra.mxu0 %v220
    %v441 = vpop.f32.mrf.mxu0
    %v442 = vadd.f32 %v429, %v441
    %v443 = vpop.f32.mrf.mxu0
    %444 = vdwg.mxu0
    %445 = vmatpush.bf16.msra.mxu0 %v389
    %446 = vmatpush.bf16.msra.mxu0 %v388
    %447 = vmatpush.bf16.msra.mxu0 %v387
    %448 = vmatpush.bf16.msra.mxu0 %v386
    %449 = vmatpush.bf16.msra.mxu0 %v385
    %450 = vmatpush.bf16.msra.mxu0 %v384
    %451 = vmatpush.bf16.msra.mxu0 %v383
    %452 = vmatpush.bf16.msra.mxu0 %v382
    %453 = vmatmul.bf16.gmra.mxu0 %v221
    %v454 = vpop.f32.mrf.mxu0
    %v455 = vadd.f32 %v442, %v454
    %v456 = vpop.f32.mrf.mxu0
    %457 = vdwg.mxu0
    %458 = vmatpush.bf16.msra.mxu0 %v381
    %459 = vmatpush.bf16.msra.mxu0 %v380
    %460 = vmatpush.bf16.msra.mxu0 %v379
    %461 = vmatpush.bf16.msra.mxu0 %v378
    %462 = vmatpush.bf16.msra.mxu0 %v377
    %463 = vmatpush.bf16.msra.mxu0 %v376
    %464 = vmatpush.bf16.msra.mxu0 %v375
    %465 = vmatpush.bf16.msra.mxu0 %v374
    %466 = vmatmul.bf16.gmra.mxu0 %v54
    %v467 = vpop.f32.mrf.mxu0
    %v468 = vadd.f32 0.0, %v467
    %v469 = vpop.f32.mrf.mxu0
    %470 = vdwg.mxu0
    %471 = vmatpush.bf16.msra.mxu0 %v389
    %472 = vmatpush.bf16.msra.mxu0 %v388
    %473 = vmatpush.bf16.msra.mxu0 %v387
    %474 = vmatpush.bf16.msra.mxu0 %v386
    %475 = vmatpush.bf16.msra.mxu0 %v385
    %476 = vmatpush.bf16.msra.mxu0 %v384
    %477 = vmatpush.bf16.msra.mxu0 %v383
    %478 = vmatpush.bf16.msra.mxu0 %v382
    %479 = vmatmul.bf16.gmra.mxu0 %v55
    %v480 = vpop.f32.mrf.mxu0
    %v481 = vadd.f32 %v468, %v480
    %v482 = vpop.f32.mrf.mxu0
    %483 = vdwg.mxu0
    %v484 = vadd.f32 %v455, %v481
    %v485 = vmax.f32 %v276, %v484
    %486 = vst [vmem:[#allocation7] sm:$0xff] %v485
    // Predicated region
    $region18: #{tpu_custom_call.1} parent=1 // pred_check
      _
    $region19: #{tpu_custom_call.1} parent=1 // pred_check_branch
      %488 = sbr.rel (0) target = $region21
    $region20: #{tpu_custom_call.1} parent=1 // pred_region
      %490 = vsyncadd [#allocation4], 0
      %s492 = sshll.u32 [#allocation7], 4
      %s493 = int_to_ptr.vmem [resolvable:$true] %s492
      %s494 = sshll.u32 %s2, 4
      %s495 = int_to_ptr.hbm [resolvable:$true] %s494
      %497 = dma.vmem_to_hbm [thread:$0]  %s493, 128, %s495, [#allocation4]
    $region21: #{tpu_custom_call.1} parent=1 // pred_fallthru
      _
    // Predicated region
    $region22: #{tpu_custom_call.1} parent=1 // pred_check
      _
    $region23: #{tpu_custom_call.1} parent=1 // pred_check_branch
      %499 = sbr.rel (0) target = $region25
    $region24: #{tpu_custom_call.1} parent=1 // pred_region
      %501 = dma.done [#allocation4], 128
    $region25: #{tpu_custom_call.1} parent=1 // pred_fallthru
      _
    %502 = vsyncpa [#allocation3], 1
    %503 = vsyncpa [#allocation6], 1
    %504 = vsyncpa [#allocation4], 1

</llo_original>
